<compile_context>
chip_gen: v7x
topology: tpu7x:2x2x1
jax: 0.10.0
libtpu: 0.0.40
codegen_flags: <defaults>
</compile_context>

<pallas_src>
import functools

import jax
import jax.numpy as jnp
from jax.experimental import pallas as pl
from jax.experimental.pallas import tpu as pltpu

IN_FEATURES = 512
LANE = 128
DEFAULT_TB = 256               # batch tile: MXU-native row count on v6e/v7x
MAX_TN = 2048                  # max output-column tile
VMEM_CAP = 48 * 1024 * 1024    # leave headroom below v7x's 64 MiB physical VMEM


def _round_up(n, m):
    return ((n + m - 1) // m) * m


def _linear_kernel(x_ref, w_ref, b_ref, o_ref):
    # x [tb, 512] bf16, w [512, tn] bf16, b [1, tn] f32  ->  o [tb, tn]
    acc = jnp.dot(x_ref[...], w_ref[...], preferred_element_type=jnp.float32)
    o_ref[...] = (acc + b_ref[...]).astype(o_ref.dtype)


def prepare_kinship_params(weight, bias, *, compute_dtype=jnp.bfloat16):
    """One-time parameter prep (transpose / pad / cast hoisted out of forward).

    weight: [F, 512] (PyTorch layout), bias: [F].
    Returns (w_t [512, F_pad] compute_dtype, b2d [1, F_pad] f32, F) with
    F_pad = round_up(F, 128) — lane-dense, no over-padding.
    Use compute_dtype=jnp.float32 if exact f32 parity with PyTorch is needed.
    """
    F, D = weight.shape
    assert D == IN_FEATURES and bias.shape == (F,)
    f_pad = _round_up(F, LANE)
    w_t = jnp.zeros((D, f_pad), compute_dtype).at[:, :F].set(
        weight.T.astype(compute_dtype))
    b2d = jnp.zeros((1, f_pad), jnp.float32).at[:, :F].set(
        bias.astype(jnp.float32))
    return w_t, b2d, F


def _pick_tn(f_pad, b_pad, tb):
    """Largest multiple of 128 that divides f_pad and is <= MAX_TN.
    If the whole grid would be (1,1) but the problem is non-trivial, split
    the columns in two so both v7x TensorCores get work."""
    if f_pad <= MAX_TN:
        tn = f_pad
    else:
        tn = LANE
        d = MAX_TN - (MAX_TN % LANE)
        while d >= LANE:
            if f_pad % d == 0:
                tn = d
                break
            d -= LANE
    if (b_pad <= tb and tn == f_pad and f_pad % (2 * LANE) == 0
            and b_pad * f_pad >= 256 * 1024):
        tn = f_pad // 2
    return tn


@functools.lru_cache(maxsize=None)
def _build_linear_call(b_pad, f_pad, tb, tn, compute_dtype, out_dtype):
    n_b = b_pad // tb
    n_f = f_pad // tn
    itemsize = jnp.dtype(compute_dtype).itemsize
    out_itemsize = jnp.dtype(out_dtype).itemsize

    # Resident VMEM estimate (double-buffered streams).
    vmem_needed = (2 * tb * IN_FEATURES * itemsize       # x tiles
                   + 2 * tb * tn * out_itemsize          # out tiles
                   + 2 * IN_FEATURES * tn * itemsize     # weight tiles
                   + 2 * tn * 4)                         # bias tiles
    vmem_limit = int(min(VMEM_CAP, max(2 * vmem_needed, 8 * 1024 * 1024)))

    # Column-tile axis is OUTER: weight/bias fetched once per column tile,
    # x re-read n_f times, output written once.
    cost = pl.CostEstimate(
        flops=2 * b_pad * IN_FEATURES * f_pad,
        transcendentals=0,
        bytes_accessed=(n_f * b_pad * IN_FEATURES * itemsize   # x reads
                        + IN_FEATURES * f_pad * itemsize       # weight (once)
                        + f_pad * 4                            # bias (once)
                        + b_pad * f_pad * out_itemsize),       # out write
    )

    return pl.pallas_call(
        _linear_kernel,
        out_shape=jax.ShapeDtypeStruct((b_pad, f_pad), out_dtype),
        grid_spec=pltpu.PrefetchScalarGridSpec(
            num_scalar_prefetch=0,
            grid=(n_f, n_b),  # column tiles outermost, batch tiles innermost
            in_specs=[
                pl.BlockSpec((tb, IN_FEATURES), lambda j, i: (i, 0)),  # x
                pl.BlockSpec((IN_FEATURES, tn), lambda j, i: (0, j)),  # weight
                pl.BlockSpec((1, tn), lambda j, i: (0, j)),            # bias
            ],
            out_specs=pl.BlockSpec((tb, tn), lambda j, i: (i, j)),
        ),
        compiler_params=pltpu.CompilerParams(
            dimension_semantics=("parallel", "parallel"),
            vmem_limit_bytes=vmem_limit,
        ),
        cost_estimate=cost,
    )


@functools.partial(jax.jit, static_argnames=("num_family_id", "tb", "out_dtype"))
def kinship_forward(x, w_t, b2d, num_family_id, *, tb=DEFAULT_TB,
                    out_dtype=jnp.float32):
    """x: [B, 512]. (w_t, b2d) from prepare_kinship_params.
    Returns [B, num_family_id] == F.linear(x, weight, bias)."""
    B, D = x.shape
    assert D == IN_FEATURES
    f_pad = w_t.shape[1]
    compute_dtype = w_t.dtype

    # Batch tile: up to `tb`; small batches become one full-dim tile.
    # Multiple of 16 because bf16 packs two rows per sublane.
    tb_eff = min(tb, _round_up(B, 16))
    b_pad = _round_up(B, tb_eff)
    tn = _pick_tn(f_pad, b_pad, tb_eff)

    x_c = x.astype(compute_dtype)
    if b_pad != B:
        x_c = jnp.pad(x_c, ((0, b_pad - B), (0, 0)))

    call = _build_linear_call(b_pad, f_pad, tb_eff, tn,
                              jnp.dtype(compute_dtype).name,
                              jnp.dtype(out_dtype).name)
    out = call(x_c, w_t, b2d)
    # TODO(synk): if these logits feed a softmax/argmax, fuse that reduction
    # into the kernel epilogue instead of materializing the full logits.
    return out[:B, :num_family_id]


if __name__ == "__main__":
    key = jax.random.PRNGKey(0)
    kx, kw, kb = jax.random.split(key, 3)

    batch = 8
    num_family_id = 200   # deliberately NOT a multiple of 128 (exercises padding)

    x = jax.random.normal(kx, (batch, IN_FEATURES), dtype=jnp.float32)
    # Deterministic init mimicking nn.Linear's uniform(-1/sqrt(in), 1/sqrt(in))
    bound = 1.0 / (IN_FEATURES ** 0.5)
    weight = jax.random.uniform(
        kw, (num_family_id, IN_FEATURES), minval=-bound, maxval=bound,
        dtype=jnp.float32)
    bias = jax.random.uniform(
        kb, (num_family_id,), minval=-bound, maxval=bound, dtype=jnp.float32)

    # One-time parameter prep (transpose / pad / bf16-cast hoisted out of fwd).
    w_t, b2d, _ = prepare_kinship_params(weight, bias)

    out = kinship_forward(x, w_t, b2d, num_family_id)
    out = jax.block_until_ready(out)

    # Reference (same semantics as PyTorch F.linear), f32 end-to-end.
    ref = x @ weight.T + bias
    assert out.shape == (batch, num_family_id)
    # bf16 inputs with f32 accumulation -> small quantization error vs f32 ref.
    assert jnp.allclose(out, ref, atol=5e-2, rtol=5e-2), float(
        jnp.max(jnp.abs(out - ref)))

    print("KERNEL_OK")
</pallas_src>

<mosaic_0001>
module attributes {stable_mosaic.version = 11 : i64} {
  func.func @_linear_kernel(%arg0: i32, %arg1: i32, %arg2: memref<16x512xbf16, #tpu.memory_space<vmem>>, %arg3: memref<512x256xbf16, #tpu.memory_space<vmem>>, %arg4: memref<1x256xf32, #tpu.memory_space<vmem>>, %arg5: memref<16x256xf32, #tpu.memory_space<vmem>>) attributes {dimension_semantics = [#tpu.dimension_semantics<parallel>, #tpu.dimension_semantics<parallel>], iteration_bounds = array<i64: 1, 1>, scalar_prefetch = 0 : i64, scratch_operands = 0 : i64, tpu.core_type = #tpu.core_type<tc>, window_params = [{transform_indices = @transform_0, window_bounds = array<i64: 16, 512>}, {transform_indices = @transform_1, window_bounds = array<i64: 512, 256>}, {transform_indices = @transform_2, window_bounds = array<i64: 1, 256>}, {transform_indices = @transform_3, window_bounds = array<i64: 16, 256>}]} {
    %c0 = arith.constant 0 : index
    %c0_0 = arith.constant 0 : index
    %0 = vector.load %arg2[%c0, %c0_0] : memref<16x512xbf16, #tpu.memory_space<vmem>>, vector<16x512xbf16>
    %c0_1 = arith.constant 0 : index
    %c0_2 = arith.constant 0 : index
    %1 = vector.load %arg3[%c0_1, %c0_2] : memref<512x256xbf16, #tpu.memory_space<vmem>>, vector<512x256xbf16>
    %cst = arith.constant dense<0.000000e+00> : vector<16x256xf32>
    %2 = tpu.matmul %0, %1, %cst {dimension_numbers = #tpu.dot_dimension_numbers<[1], [0], [0], [1], [0, 0, 1, 1], [], []>} : vector<16x512xbf16>, vector<512x256xbf16>, vector<16x256xf32> -> vector<16x256xf32>
    %c0_3 = arith.constant 0 : index
    %c0_4 = arith.constant 0 : index
    %3 = vector.load %arg4[%c0_3, %c0_4] : memref<1x256xf32, #tpu.memory_space<vmem>>, vector<1x256xf32>
    %4 = vector.broadcast %3 : vector<1x256xf32> to vector<16x256xf32>
    %5 = arith.addf %2, %4 : vector<16x256xf32>
    %c0_5 = arith.constant 0 : index
    %c0_6 = arith.constant 0 : index
    %6 = vector.load %arg5[%c0_5, %c0_6] : memref<16x256xf32, #tpu.memory_space<vmem>>, vector<16x256xf32>
    tpu.vector_store %arg5[%c0_5, %c0_6], %5 {strides = array<i32>} : memref<16x256xf32, #tpu.memory_space<vmem>>, vector<16x256xf32>,
    return
  }
  func.func @transform_0(%arg0: i32, %arg1: i32) -> (i32, i32) {
    %c0_i32 = arith.constant 0 : i32
    %c0_i32_0 = arith.constant 0 : i32
    return %arg1, %c0_i32 : i32, i32
  }
  func.func @transform_1(%arg0: i32, %arg1: i32) -> (i32, i32) {
    %c0_i32 = arith.constant 0 : i32
    %c0_i32_0 = arith.constant 0 : i32
    return %c0_i32, %arg0 : i32, i32
  }
  func.func @transform_2(%arg0: i32, %arg1: i32) -> (i32, i32) {
    %c0_i32 = arith.constant 0 : i32
    %c0_i32_0 = arith.constant 0 : i32
    return %c0_i32, %arg0 : i32, i32
  }
  func.func @transform_3(%arg0: i32, %arg1: i32) -> (i32, i32) {
    %c0_i32 = arith.constant 0 : i32
    return %arg1, %arg0 : i32, i32
  }
}

</mosaic_0001>

<llo_original>
// kernel: kinship_forward.1
$region0: #{kinship_forward.1}
  #allocation0 [shape = 'u32[]', space=smem, size = 0x4, offset = 0x4, fixed_abs, tag = 'smem constant byte address 0x4 - core index']
  #allocation1 [shape = 'u32[144,128]{1,0:T(1,128)}', space=vmem, size = 0x12000, scoped, tag = 'internal scratch']
  %s0 = inlined_call_operand.vmem [shape: bf16[16,512], index: 0, kind: input, shape index: {}]
  %s1 = inlined_call_operand.hbm [shape: bf16[512,256], index: 1, kind: input, shape index: {}]
  %s2 = inlined_call_operand.vmem [shape: f32[1,256], index: 2, kind: input, shape index: {}]
  %s3 = inlined_call_operand.vmem [shape: f32[16,256], index: 3, kind: output, shape index: {}]
  %s4 = sld [smem:[#allocation0]]
  $region26: #{kinship_forward.1} parent=0
    _
  %s6 = ssub.s32 1, %s4
  %s7 = scalar_select 0, %s6, %s4
  $region1: #{kinship_forward.1} parent=0
    #allocation2 [shape = 'u8[262144]{0}', space=vmem, size = 0x40000, scoped, tag = 'input window, operand 1, single buffered']
    #allocation3 [shape = 's32[1]{0}', space=sflag, size = 0x4, scoped, tag = 'scoped memory for kinship_forward.1']
    %8 = vsyncpa [#allocation3], 0
    // Predicated region
    $region2: #{kinship_forward.1} parent=1 // pred_check
      _
    $region3: #{kinship_forward.1} parent=1 // pred_check_branch
      %10 = sbr.rel (0) target = $region5
    $region4: #{kinship_forward.1} parent=1 // pred_region
      _
    $region5: #{kinship_forward.1} parent=1 // pred_fallthru
      _
    // Predicated region
    $region6: #{kinship_forward.1} parent=1 // pred_check
      _
    $region7: #{kinship_forward.1} parent=1 // pred_check_branch
      %12 = sbr.rel (0) target = $region9
    $region8: #{kinship_forward.1} parent=1 // pred_region
      %s14 = ssub.s32 8192, 8192
      %15 = vsyncadd [#allocation3], %s14
      %s16 = sshll.u32 [#allocation2], 4
      %s17 = int_to_ptr.vmem [resolvable:$true] %s16
      %22 = dma.hbm_to_vmem [thread:$0]  %s1, 8192, %s17, [#allocation3], 128, 128, 8
    $region9: #{kinship_forward.1} parent=1 // pred_fallthru
      _
    // Predicated region
    $region10: #{kinship_forward.1} parent=1 // pred_check
      _
    $region11: #{kinship_forward.1} parent=1 // pred_check_branch
      %24 = sbr.rel (0) target = $region13
    $region12: #{kinship_forward.1} parent=1 // pred_region
      _
    $region13: #{kinship_forward.1} parent=1 // pred_fallthru
      _
    // Predicated region
    $region14: #{kinship_forward.1} parent=1 // pred_check
      _
    $region15: #{kinship_forward.1} parent=1 // pred_check_branch
      %26 = sbr.rel (0) target = $region17
    $region16: #{kinship_forward.1} parent=1 // pred_region
      %27 = dma.done [#allocation3], 8192
    $region17: #{kinship_forward.1} parent=1 // pred_fallthru
      _
    %v28 = vld [vmem:[%s0] sm:$0xff]
    %v29 = vld [vmem:[%s0 + $0x8] sm:$0xff]
    %v30 = vld [vmem:[%s0 + $0x10] sm:$0xff]
    %v31 = vld [vmem:[%s0 + $0x18] sm:$0xff]
    %v32 = vld [vmem:[#allocation2] sm:$0xff]
    %v33 = vld [vmem:[#allocation2 + $0x8] sm:$0xff]
    %v34 = vld [vmem:[#allocation2 + $0x10] sm:$0xff]
    %v35 = vld [vmem:[#allocation2 + $0x18] sm:$0xff]
    %v36 = vld [vmem:[#allocation2 + $0x20] sm:$0xff]
    %v37 = vld [vmem:[#allocation2 + $0x28] sm:$0xff]
    %v38 = vld [vmem:[#allocation2 + $0x30] sm:$0xff]
    %v39 = vld [vmem:[#allocation2 + $0x38] sm:$0xff]
    %v40 = vld [vmem:[#allocation2 + $0x40] sm:$0xff]
    %v41 = vld [vmem:[#allocation2 + $0x48] sm:$0xff]
    %v42 = vld [vmem:[#allocation2 + $0x50] sm:$0xff]
    %v43 = vld [vmem:[#allocation2 + $0x58] sm:$0xff]
    %v44 = vld [vmem:[#allocation2 + $0x60] sm:$0xff]
    %v45 = vld [vmem:[#allocation2 + $0x68] sm:$0xff]
    %v46 = vld [vmem:[#allocation2 + $0x70] sm:$0xff]
    %v47 = vld [vmem:[#allocation2 + $0x78] sm:$0xff]
    %v48 = vld [vmem:[#allocation2 + $0x80] sm:$0xff]
    %v49 = vld [vmem:[#allocation2 + $0x88] sm:$0xff]
    %v50 = vld [vmem:[#allocation2 + $0x90] sm:$0xff]
    %v51 = vld [vmem:[#allocation2 + $0x98] sm:$0xff]
    %v52 = vld [vmem:[#allocation2 + $0xa0] sm:$0xff]
    %v53 = vld [vmem:[#allocation2 + $0xa8] sm:$0xff]
    %v54 = vld [vmem:[#allocation2 + $0xb0] sm:$0xff]
    %v55 = vld [vmem:[#allocation2 + $0xb8] sm:$0xff]
    %v56 = vld [vmem:[#allocation2 + $0xc0] sm:$0xff]
    %v57 = vld [vmem:[#allocation2 + $0xc8] sm:$0xff]
    %v58 = vld [vmem:[#allocation2 + $0xd0] sm:$0xff]
    %v59 = vld [vmem:[#allocation2 + $0xd8] sm:$0xff]
    %v60 = vld [vmem:[#allocation2 + $0xe0] sm:$0xff]
    %v61 = vld [vmem:[#allocation2 + $0xe8] sm:$0xff]
    %v62 = vld [vmem:[#allocation2 + $0xf0] sm:$0xff]
    %v63 = vld [vmem:[#allocation2 + $0xf8] sm:$0xff]
    %v64 = vld [vmem:[#allocation2 + $0x100] sm:$0xff]
    %v65 = vld [vmem:[#allocation2 + $0x108] sm:$0xff]
    %v66 = vld [vmem:[#allocation2 + $0x110] sm:$0xff]
    %v67 = vld [vmem:[#allocation2 + $0x118] sm:$0xff]
    %v68 = vld [vmem:[#allocation2 + $0x120] sm:$0xff]
    %v69 = vld [vmem:[#allocation2 + $0x128] sm:$0xff]
    %v70 = vld [vmem:[#allocation2 + $0x130] sm:$0xff]
    %v71 = vld [vmem:[#allocation2 + $0x138] sm:$0xff]
    %v72 = vld [vmem:[#allocation2 + $0x140] sm:$0xff]
    %v73 = vld [vmem:[#allocation2 + $0x148] sm:$0xff]
    %v74 = vld [vmem:[#allocation2 + $0x150] sm:$0xff]
    %v75 = vld [vmem:[#allocation2 + $0x158] sm:$0xff]
    %v76 = vld [vmem:[#allocation2 + $0x160] sm:$0xff]
    %v77 = vld [vmem:[#allocation2 + $0x168] sm:$0xff]
    %v78 = vld [vmem:[#allocation2 + $0x170] sm:$0xff]
    %v79 = vld [vmem:[#allocation2 + $0x178] sm:$0xff]
    %v80 = vld [vmem:[#allocation2 + $0x180] sm:$0xff]
    %v81 = vld [vmem:[#allocation2 + $0x188] sm:$0xff]
    %v82 = vld [vmem:[#allocation2 + $0x190] sm:$0xff]
    %v83 = vld [vmem:[#allocation2 + $0x198] sm:$0xff]
    %v84 = vld [vmem:[#allocation2 + $0x1a0] sm:$0xff]
    %v85 = vld [vmem:[#allocation2 + $0x1a8] sm:$0xff]
    %v86 = vld [vmem:[#allocation2 + $0x1b0] sm:$0xff]
    %v87 = vld [vmem:[#allocation2 + $0x1b8] sm:$0xff]
    %v88 = vld [vmem:[#allocation2 + $0x1c0] sm:$0xff]
    %v89 = vld [vmem:[#allocation2 + $0x1c8] sm:$0xff]
    %v90 = vld [vmem:[#allocation2 + $0x1d0] sm:$0xff]
    %v91 = vld [vmem:[#allocation2 + $0x1d8] sm:$0xff]
    %v92 = vld [vmem:[#allocation2 + $0x1e0] sm:$0xff]
    %v93 = vld [vmem:[#allocation2 + $0x1e8] sm:$0xff]
    %v94 = vld [vmem:[#allocation2 + $0x1f0] sm:$0xff]
    %v95 = vld [vmem:[#allocation2 + $0x1f8] sm:$0xff]
    %v96 = vld [vmem:[%s2] sm:$0x3]
    %v98 = vlaneseq
    %v99 = vshrl.u32 %v98, 7
    %v100 = vsub.s32 0, %v99
    %v101 = vrot.slane %v96, %v100
    %v102 = vlaneseq
    %v103 = vshrl.u32 %v102, 7
    %v104 = vsub.s32 1, %v103
    %v105 = vrot.slane %v96, %v104
    %v112 = vunpack.c.l.b16 %v28
    %v113 = vunpack.c.h.b16 %v28
    %v114 = vunpack.c.l.b16 %v29
    %v115 = vunpack.c.h.b16 %v29
    %v116 = vunpack.c.l.b16 %v30
    %v117 = vunpack.c.h.b16 %v30
    %v118 = vunpack.c.l.b16 %v31
    %v119 = vunpack.c.h.b16 %v31
    %v120 = vpack.c.b16 %v116, %v112
    %v121 = vpack.c.b16 %v117, %v113
    %v122 = vpack.c.b16 %v118, %v114
    %v123 = vpack.c.b16 %v119, %v115
    %v192 = vunpack.c.l.b16 %v32
    %v193 = vunpack.c.h.b16 %v32
    %v194 = vunpack.c.l.b16 %v33
    %v195 = vunpack.c.h.b16 %v33
    %v196 = vunpack.c.l.b16 %v34
    %v197 = vunpack.c.h.b16 %v34
    %v198 = vunpack.c.l.b16 %v35
    %v199 = vunpack.c.h.b16 %v35
    %v200 = vunpack.c.l.b16 %v36
    %v201 = vunpack.c.h.b16 %v36
    %v202 = vunpack.c.l.b16 %v37
    %v203 = vunpack.c.h.b16 %v37
    %v204 = vunpack.c.l.b16 %v38
    %v205 = vunpack.c.h.b16 %v38
    %v206 = vunpack.c.l.b16 %v39
    %v207 = vunpack.c.h.b16 %v39
    %v208 = vunpack.c.l.b16 %v40
    %v209 = vunpack.c.h.b16 %v40
    %v210 = vunpack.c.l.b16 %v41
    %v211 = vunpack.c.h.b16 %v41
    %v212 = vunpack.c.l.b16 %v42
    %v213 = vunpack.c.h.b16 %v42
    %v214 = vunpack.c.l.b16 %v43
    %v215 = vunpack.c.h.b16 %v43
    %v216 = vunpack.c.l.b16 %v44
    %v217 = vunpack.c.h.b16 %v44
    %v218 = vunpack.c.l.b16 %v45
    %v219 = vunpack.c.h.b16 %v45
    %v220 = vunpack.c.l.b16 %v46
    %v221 = vunpack.c.h.b16 %v46
    %v222 = vunpack.c.l.b16 %v47
    %v223 = vunpack.c.h.b16 %v47
    %v224 = vunpack.c.l.b16 %v48
    %v225 = vunpack.c.h.b16 %v48
    %v226 = vunpack.c.l.b16 %v49
    %v227 = vunpack.c.h.b16 %v49
    %v228 = vunpack.c.l.b16 %v50
    %v229 = vunpack.c.h.b16 %v50
    %v230 = vunpack.c.l.b16 %v51
    %v231 = vunpack.c.h.b16 %v51
    %v232 = vunpack.c.l.b16 %v52
    %v233 = vunpack.c.h.b16 %v52
    %v234 = vunpack.c.l.b16 %v53
    %v235 = vunpack.c.h.b16 %v53
    %v236 = vunpack.c.l.b16 %v54
    %v237 = vunpack.c.h.b16 %v54
    %v238 = vunpack.c.l.b16 %v55
    %v239 = vunpack.c.h.b16 %v55
    %v240 = vunpack.c.l.b16 %v56
    %v241 = vunpack.c.h.b16 %v56
    %v242 = vunpack.c.l.b16 %v57
    %v243 = vunpack.c.h.b16 %v57
    %v244 = vunpack.c.l.b16 %v58
    %v245 = vunpack.c.h.b16 %v58
    %v246 = vunpack.c.l.b16 %v59
    %v247 = vunpack.c.h.b16 %v59
    %v248 = vunpack.c.l.b16 %v60
    %v249 = vunpack.c.h.b16 %v60
    %v250 = vunpack.c.l.b16 %v61
    %v251 = vunpack.c.h.b16 %v61
    %v252 = vunpack.c.l.b16 %v62
    %v253 = vunpack.c.h.b16 %v62
    %v254 = vunpack.c.l.b16 %v63
    %v255 = vunpack.c.h.b16 %v63
    %v256 = vunpack.c.l.b16 %v64
    %v257 = vunpack.c.h.b16 %v64
    %v258 = vunpack.c.l.b16 %v65
    %v259 = vunpack.c.h.b16 %v65
    %v260 = vunpack.c.l.b16 %v66
    %v261 = vunpack.c.h.b16 %v66
    %v262 = vunpack.c.l.b16 %v67
    %v263 = vunpack.c.h.b16 %v67
    %v264 = vunpack.c.l.b16 %v68
    %v265 = vunpack.c.h.b16 %v68
    %v266 = vunpack.c.l.b16 %v69
    %v267 = vunpack.c.h.b16 %v69
    %v268 = vunpack.c.l.b16 %v70
    %v269 = vunpack.c.h.b16 %v70
    %v270 = vunpack.c.l.b16 %v71
    %v271 = vunpack.c.h.b16 %v71
    %v272 = vunpack.c.l.b16 %v72
    %v273 = vunpack.c.h.b16 %v72
    %v274 = vunpack.c.l.b16 %v73
    %v275 = vunpack.c.h.b16 %v73
    %v276 = vunpack.c.l.b16 %v74
    %v277 = vunpack.c.h.b16 %v74
    %v278 = vunpack.c.l.b16 %v75
    %v279 = vunpack.c.h.b16 %v75
    %v280 = vunpack.c.l.b16 %v76
    %v281 = vunpack.c.h.b16 %v76
    %v282 = vunpack.c.l.b16 %v77
    %v283 = vunpack.c.h.b16 %v77
    %v284 = vunpack.c.l.b16 %v78
    %v285 = vunpack.c.h.b16 %v78
    %v286 = vunpack.c.l.b16 %v79
    %v287 = vunpack.c.h.b16 %v79
    %v288 = vunpack.c.l.b16 %v80
    %v289 = vunpack.c.h.b16 %v80
    %v290 = vunpack.c.l.b16 %v81
    %v291 = vunpack.c.h.b16 %v81
    %v292 = vunpack.c.l.b16 %v82
    %v293 = vunpack.c.h.b16 %v82
    %v294 = vunpack.c.l.b16 %v83
    %v295 = vunpack.c.h.b16 %v83
    %v296 = vunpack.c.l.b16 %v84
    %v297 = vunpack.c.h.b16 %v84
    %v298 = vunpack.c.l.b16 %v85
    %v299 = vunpack.c.h.b16 %v85
    %v300 = vunpack.c.l.b16 %v86
    %v301 = vunpack.c.h.b16 %v86
    %v302 = vunpack.c.l.b16 %v87
    %v303 = vunpack.c.h.b16 %v87
    %v304 = vunpack.c.l.b16 %v88
    %v305 = vunpack.c.h.b16 %v88
    %v306 = vunpack.c.l.b16 %v89
    %v307 = vunpack.c.h.b16 %v89
    %v308 = vunpack.c.l.b16 %v90
    %v309 = vunpack.c.h.b16 %v90
    %v310 = vunpack.c.l.b16 %v91
    %v311 = vunpack.c.h.b16 %v91
    %v312 = vunpack.c.l.b16 %v92
    %v313 = vunpack.c.h.b16 %v92
    %v314 = vunpack.c.l.b16 %v93
    %v315 = vunpack.c.h.b16 %v93
    %v316 = vunpack.c.l.b16 %v94
    %v317 = vunpack.c.h.b16 %v94
    %v318 = vunpack.c.l.b16 %v95
    %v319 = vunpack.c.h.b16 %v95
    %v320 = vpack.c.b16 %v194, %v192
    %v321 = vpack.c.b16 %v195, %v193
    %v322 = vpack.c.b16 %v198, %v196
    %v323 = vpack.c.b16 %v199, %v197
    %v324 = vpack.c.b16 %v202, %v200
    %v325 = vpack.c.b16 %v203, %v201
    %v326 = vpack.c.b16 %v206, %v204
    %v327 = vpack.c.b16 %v207, %v205
    %v328 = vpack.c.b16 %v210, %v208
    %v329 = vpack.c.b16 %v211, %v209
    %v330 = vpack.c.b16 %v214, %v212
    %v331 = vpack.c.b16 %v215, %v213
    %v332 = vpack.c.b16 %v218, %v216
    %v333 = vpack.c.b16 %v219, %v217
    %v334 = vpack.c.b16 %v222, %v220
    %v335 = vpack.c.b16 %v223, %v221
    %v336 = vpack.c.b16 %v226, %v224
    %v337 = vpack.c.b16 %v227, %v225
    %v338 = vpack.c.b16 %v230, %v228
    %v339 = vpack.c.b16 %v231, %v229
    %v340 = vpack.c.b16 %v234, %v232
    %v341 = vpack.c.b16 %v235, %v233
    %v342 = vpack.c.b16 %v238, %v236
    %v343 = vpack.c.b16 %v239, %v237
    %v344 = vpack.c.b16 %v242, %v240
    %v345 = vpack.c.b16 %v243, %v241
    %v346 = vpack.c.b16 %v246, %v244
    %v347 = vpack.c.b16 %v247, %v245
    %v348 = vpack.c.b16 %v250, %v248
    %v349 = vpack.c.b16 %v251, %v249
    %v350 = vpack.c.b16 %v254, %v252
    %v351 = vpack.c.b16 %v255, %v253
    %v352 = vpack.c.b16 %v258, %v256
    %v353 = vpack.c.b16 %v259, %v257
    %v354 = vpack.c.b16 %v262, %v260
    %v355 = vpack.c.b16 %v263, %v261
    %v356 = vpack.c.b16 %v266, %v264
    %v357 = vpack.c.b16 %v267, %v265
    %v358 = vpack.c.b16 %v270, %v268
    %v359 = vpack.c.b16 %v271, %v269
    %v360 = vpack.c.b16 %v274, %v272
    %v361 = vpack.c.b16 %v275, %v273
    %v362 = vpack.c.b16 %v278, %v276
    %v363 = vpack.c.b16 %v279, %v277
    %v364 = vpack.c.b16 %v282, %v280
    %v365 = vpack.c.b16 %v283, %v281
    %v366 = vpack.c.b16 %v286, %v284
    %v367 = vpack.c.b16 %v287, %v285
    %v368 = vpack.c.b16 %v290, %v288
    %v369 = vpack.c.b16 %v291, %v289
    %v370 = vpack.c.b16 %v294, %v292
    %v371 = vpack.c.b16 %v295, %v293
    %v372 = vpack.c.b16 %v298, %v296
    %v373 = vpack.c.b16 %v299, %v297
    %v374 = vpack.c.b16 %v302, %v300
    %v375 = vpack.c.b16 %v303, %v301
    %v376 = vpack.c.b16 %v306, %v304
    %v377 = vpack.c.b16 %v307, %v305
    %v378 = vpack.c.b16 %v310, %v308
    %v379 = vpack.c.b16 %v311, %v309
    %v380 = vpack.c.b16 %v314, %v312
    %v381 = vpack.c.b16 %v315, %v313
    %v382 = vpack.c.b16 %v318, %v316
    %v383 = vpack.c.b16 %v319, %v317
    %448 = vmatprep.subr.bf16.mxu0 %v321
    %449 = vmatpush1.bf16.msra.mxu0 %v320
    %450 = vmatprep.subr.bf16.mxu0 %v323
    %451 = vmatpush1.bf16.msra.mxu0 %v322
    %452 = vmatprep.subr.bf16.mxu0 %v325
    %453 = vmatpush1.bf16.msra.mxu0 %v324
    %454 = vmatprep.subr.bf16.mxu0 %v327
    %455 = vmatpush1.bf16.msra.mxu0 %v326
    %456 = vmatprep.subr.bf16.mxu0 %v329
    %457 = vmatpush1.bf16.msra.mxu0 %v328
    %458 = vmatprep.subr.bf16.mxu0 %v331
    %459 = vmatpush1.bf16.msra.mxu0 %v330
    %460 = vmatprep.subr.bf16.mxu0 %v333
    %461 = vmatpush1.bf16.msra.mxu0 %v332
    %462 = vmatprep.subr.bf16.mxu0 %v335
    %463 = vmatpush1.bf16.msra.mxu0 %v334
    %464 = vmatprep.subr.bf16.mxu0 %v337
    %465 = vmatpush1.bf16.msra.mxu0 %v336
    %466 = vmatprep.subr.bf16.mxu0 %v339
    %467 = vmatpush1.bf16.msra.mxu0 %v338
    %468 = vmatprep.subr.bf16.mxu0 %v341
    %469 = vmatpush1.bf16.msra.mxu0 %v340
    %470 = vmatprep.subr.bf16.mxu0 %v343
    %471 = vmatpush1.bf16.msra.mxu0 %v342
    %472 = vmatprep.subr.bf16.mxu0 %v345
    %473 = vmatpush1.bf16.msra.mxu0 %v344
    %474 = vmatprep.subr.bf16.mxu0 %v347
    %475 = vmatpush1.bf16.msra.mxu0 %v346
    %476 = vmatprep.subr.bf16.mxu0 %v349
    %477 = vmatpush1.bf16.msra.mxu0 %v348
    %478 = vmatprep.subr.bf16.mxu0 %v351
    %479 = vmatpush1.bf16.msra.mxu0 %v350
    %480 = vmatprep.mubr.bf16.mxu0 %v121
    %481 = vmatmul.mubr.bf16.gmra.mrb[0].mxu0 %v120
    %v482 = vpop.f32.mrb[0].mxu0
    %v483 = vadd.f32 %v101, %v482
    %v484 = vpop.f32.mrb[0].mxu0
    %v485 = vadd.f32 %v105, %v484
    %v486 = vpop.f32.mrb[0].mxu0
    %v487 = vadd.f32 %v101, %v486
    %v488 = vpop.f32.mrb[0].mxu0
    %v489 = vadd.f32 %v105, %v488
    %490 = vdwg.mxu0
    %491 = vmatprep.subr.bf16.mxu0 %v353
    %492 = vmatpush1.bf16.msra.mxu0 %v352
    %493 = vmatprep.subr.bf16.mxu0 %v355
    %494 = vmatpush1.bf16.msra.mxu0 %v354
    %495 = vmatprep.subr.bf16.mxu0 %v357
    %496 = vmatpush1.bf16.msra.mxu0 %v356
    %497 = vmatprep.subr.bf16.mxu0 %v359
    %498 = vmatpush1.bf16.msra.mxu0 %v358
    %499 = vmatprep.subr.bf16.mxu0 %v361
    %500 = vmatpush1.bf16.msra.mxu0 %v360
    %501 = vmatprep.subr.bf16.mxu0 %v363
    %502 = vmatpush1.bf16.msra.mxu0 %v362
    %503 = vmatprep.subr.bf16.mxu0 %v365
    %504 = vmatpush1.bf16.msra.mxu0 %v364
    %505 = vmatprep.subr.bf16.mxu0 %v367
    %506 = vmatpush1.bf16.msra.mxu0 %v366
    %507 = vmatprep.subr.bf16.mxu0 %v369
    %508 = vmatpush1.bf16.msra.mxu0 %v368
    %509 = vmatprep.subr.bf16.mxu0 %v371
    %510 = vmatpush1.bf16.msra.mxu0 %v370
    %511 = vmatprep.subr.bf16.mxu0 %v373
    %512 = vmatpush1.bf16.msra.mxu0 %v372
    %513 = vmatprep.subr.bf16.mxu0 %v375
    %514 = vmatpush1.bf16.msra.mxu0 %v374
    %515 = vmatprep.subr.bf16.mxu0 %v377
    %516 = vmatpush1.bf16.msra.mxu0 %v376
    %517 = vmatprep.subr.bf16.mxu0 %v379
    %518 = vmatpush1.bf16.msra.mxu0 %v378
    %519 = vmatprep.subr.bf16.mxu0 %v381
    %520 = vmatpush1.bf16.msra.mxu0 %v380
    %521 = vmatprep.subr.bf16.mxu0 %v383
    %522 = vmatpush1.bf16.msra.mxu0 %v382
    %523 = vmatprep.mubr.bf16.mxu0 %v123
    %524 = vmatmul.mubr.bf16.gmra.mrb[0].mxu0 %v122
    %v525 = vpop.f32.mrb[0].mxu0
    %v526 = vadd.f32 %v483, %v525
    %v527 = vpop.f32.mrb[0].mxu0
    %v528 = vadd.f32 %v485, %v527
    %v529 = vpop.f32.mrb[0].mxu0
    %v530 = vadd.f32 %v487, %v529
    %v531 = vpop.f32.mrb[0].mxu0
    %v532 = vadd.f32 %v489, %v531
    %533 = vdwg.mxu0
    %534 = vst [vmem:[%s3] sm:$0xff] %v526
    %535 = vst [vmem:[%s3 + $0x8] sm:$0xff] %v528
    %536 = vst [vmem:[%s3 + $0x10] sm:$0xff] %v530
    %537 = vst [vmem:[%s3 + $0x18] sm:$0xff] %v532
    // Predicated region
    $region18: #{kinship_forward.1} parent=1 // pred_check
      _
    $region19: #{kinship_forward.1} parent=1 // pred_check_branch
      %539 = sbr.rel (0) target = $region21
    $region20: #{kinship_forward.1} parent=1 // pred_region
      _
    $region21: #{kinship_forward.1} parent=1 // pred_fallthru
      _
    // Predicated region
    $region22: #{kinship_forward.1} parent=1 // pred_check
      _
    $region23: #{kinship_forward.1} parent=1 // pred_check_branch
      %541 = sbr.rel (0) target = $region25
    $region24: #{kinship_forward.1} parent=1 // pred_region
      _
    $region25: #{kinship_forward.1} parent=1 // pred_fallthru
      _
    %542 = vsyncpa [#allocation3], 1

</llo_original>
